<compile_context>
chip_gen: v6e
topology: v6e:2x2x1
jax: 0.10.0
libtpu: 0.0.40
codegen_flags: <defaults>
</compile_context>

<pallas_src>
import jax
import jax.numpy as jnp
from jax.experimental import pallas as pl
from jax.experimental.pallas import tpu as pltpu

# Per-tile VMEM budget (bytes). Worst case resident VMEM with double-buffered
# input + output blocks is ~4x this: ~8 MiB, far under v7x's 64 MiB/TC and
# v5e/v6e's 128 MiB.
_TILE_BYTES_CAP = 2 * 1024 * 1024
# Cap lane width so large inputs keep many row-tiles (grid steps) for
# pipelining and dual-TC sharding on v7x.
_MAX_LANE_COLS = 8192


def _copy_kernel(x_ref, o_ref):
    # Identity pass-through of one VMEM tile (subclass compute would go here).
    o_ref[...] = x_ref[...]


def _lane_maximal_cols(total):
    """Largest multiple-of-128 divisor of `total` that is <= _MAX_LANE_COLS."""
    if total % 128 != 0:
        return None
    m = total // 128
    best = 128
    i = 1
    while i * i <= m:
        if m % i == 0:
            for d in (i, m // i):
                cols = 128 * d
                if best < cols <= _MAX_LANE_COLS:
                    best = cols
        i += 1
    return best


def _forward_impl(image):
    b, c, h, w = image.shape
    total = b * c * h * w
    itemsize = jnp.dtype(image.dtype).itemsize
    # Sublane packing: 8 rows for 32-bit, 16 for 16-bit, 32 for 8-bit dtypes.
    sublane = 8 * max(1, 4 // itemsize)

    cols = _lane_maximal_cols(total)
    if cols is None:
        # TODO(synk): element counts not divisible by 128 fall back to a single
        # full-array block (legal, but stores are lane-masked).
        rows, cols = b * c, h * w
        tr = rows
    else:
        rows = total // cols
        if rows * cols * itemsize <= _TILE_BYTES_CAP or rows <= sublane:
            # Tiny input (e.g. the test shape): one grid step, no tiling overhead.
            tr = rows
        else:
            tr = (_TILE_BYTES_CAP // (cols * itemsize)) // sublane * sublane
            tr = min(max(tr, sublane), rows)

    x2d = image.reshape(rows, cols)
    grid = (pl.cdiv(rows, tr),)

    out2d = pl.pallas_call(
        _copy_kernel,
        out_shape=jax.ShapeDtypeStruct((rows, cols), image.dtype),
        grid=grid,
        in_specs=[pl.BlockSpec((tr, cols), lambda i: (i, 0))],
        out_specs=pl.BlockSpec((tr, cols), lambda i: (i, 0)),
        # Pure pass-through: let the output reuse the input HBM buffer.
        input_output_aliases={0: 0},
        cost_estimate=pl.CostEstimate(
            flops=0,
            transcendentals=0,
            bytes_accessed=2 * total * itemsize,
        ),
        compiler_params=pltpu.CompilerParams(
            dimension_semantics=("parallel",),  # shard row-tiles across v7x's 2 TCs
            vmem_limit_bytes=32 * 1024 * 1024,
        ),
    )(x2d)

    return out2d.reshape(b, c, h, w)


attack_module_forward = jax.jit(_forward_impl)


if __name__ == "__main__":
    key = jax.random.PRNGKey(0)
    # Small shapes consistent with the module's documented 4D contract.
    B, C, H, W = 2, 4, 16, 16
    image = jax.random.normal(key, (B, C, H, W), dtype=jnp.float32)

    out = attack_module_forward(image)
    out = jax.block_until_ready(out)

    assert out.shape == image.shape, (out.shape, image.shape)
    assert out.dtype == image.dtype, (out.dtype, image.dtype)
    assert bool(jnp.all(out == image)), "identity pass-through mismatch"

    print("KERNEL_OK")
</pallas_src>

<mosaic_0001>
module attributes {stable_mosaic.version = 11 : i64} {
  func.func @_copy_kernel(%arg0: i32, %arg1: memref<1x2048xf32, #tpu.memory_space<vmem>>, %arg2: memref<1x2048xf32, #tpu.memory_space<vmem>>) attributes {dimension_semantics = [#tpu.dimension_semantics<parallel>], iteration_bounds = array<i64: 1>, scalar_prefetch = 0 : i64, scratch_operands = 0 : i64, tpu.core_type = #tpu.core_type<tc>, window_params = [{transform_indices = @transform_0, window_bounds = array<i64: 1, 2048>}, {transform_indices = @transform_1, window_bounds = array<i64: 1, 2048>}]} {
    %c0 = arith.constant 0 : index
    %c0_0 = arith.constant 0 : index
    %0 = vector.load %arg1[%c0, %c0_0] : memref<1x2048xf32, #tpu.memory_space<vmem>>, vector<1x2048xf32>
    %c0_1 = arith.constant 0 : index
    %c0_2 = arith.constant 0 : index
    %1 = vector.load %arg2[%c0_1, %c0_2] : memref<1x2048xf32, #tpu.memory_space<vmem>>, vector<1x2048xf32>
    tpu.vector_store %arg2[%c0_1, %c0_2], %0 {strides = array<i32>} : memref<1x2048xf32, #tpu.memory_space<vmem>>, vector<1x2048xf32>,
    return
  }
  func.func @transform_0(%arg0: i32) -> (i32, i32) {
    %c0_i32 = arith.constant 0 : i32
    %c0_i32_0 = arith.constant 0 : i32
    return %arg0, %c0_i32 : i32, i32
  }
  func.func @transform_1(%arg0: i32) -> (i32, i32) {
    %c0_i32 = arith.constant 0 : i32
    %c0_i32_0 = arith.constant 0 : i32
    return %arg0, %c0_i32 : i32, i32
  }
}

</mosaic_0001>

<llo_original>
// kernel: _forward_impl.1
$region0: #{_forward_impl.1}
  #allocation0 [shape = 'u32[]', space=smem, size = 0x4, offset = 0x4, fixed_abs, tag = 'smem constant byte address 0x4 - core index']
  #allocation1 [shape = 'u32[144,128]{1,0:T(1,128)}', space=vmem, size = 0x12000, scoped, tag = 'internal scratch']
  %s0 = inlined_call_operand.vmem [shape: f32[1,2048], index: 0, kind: input, shape index: {}, may-alias: {0,1}]
  %s1 = inlined_call_operand.vmem [shape: f32[1,2048], index: 1, kind: output, shape index: {}, may-alias: {0,1}]
  %s2 = sld [smem:[#allocation0]]
  $region14: #{_forward_impl.1} parent=0
    _
  %s4 = ssub.s32 1, %s2
  %s5 = scalar_select 0, %s4, %s2
  // Predicated region
  $region2: #{_forward_impl.1} parent=0 // pred_check
    _
  $region3: #{_forward_impl.1} parent=0 // pred_check_branch
    %7 = sbr.rel (0) target = $region5
  $region4: #{_forward_impl.1} parent=0 // pred_region
    _
  $region5: #{_forward_impl.1} parent=0 // pred_fallthru
    _
  %v8 = vld [vmem:[%s0] sm:$0xff]
  %v9 = vld [vmem:[%s0 + $0x8] sm:$0xff]
  %10 = vst [vmem:[%s1] sm:$0xff] %v8
  %11 = vst [vmem:[%s1 + $0x8] sm:$0xff] %v9
  // Predicated region
  $region6: #{_forward_impl.1} parent=0 // pred_check
    _
  $region7: #{_forward_impl.1} parent=0 // pred_check_branch
    %13 = sbr.rel (0) target = $region9
  $region8: #{_forward_impl.1} parent=0 // pred_region
    _
  $region9: #{_forward_impl.1} parent=0 // pred_fallthru
    _
  // Predicated region
  $region10: #{_forward_impl.1} parent=0 // pred_check
    _
  $region11: #{_forward_impl.1} parent=0 // pred_check_branch
    %15 = sbr.rel (0) target = $region13
  $region12: #{_forward_impl.1} parent=0 // pred_region
    _
  $region13: #{_forward_impl.1} parent=0 // pred_fallthru
    _

</llo_original>
